<compile_context>
chip_gen: v7x
topology: tpu7x:2x2x1
jax: 0.10.0
libtpu: 0.0.40
codegen_flags: <defaults>
</compile_context>

<pallas_src>
import math

import jax
import jax.numpy as jnp
from jax import lax
from jax.experimental import pallas as pl
from jax.experimental.pallas import tpu as pltpu


def _band_weights(w_hwio, W):
    """(3, 3, C, C) HWIO conv weights -> (3, W*C, W*C) banded matmul weights.

    band[di][w_in*C + ci, w_out*C + co] = w_hwio[di, dj, ci, co]
    with w_in = w_out + dj - 1; entries with w_in outside [0, W) are absent
    (zero), which implements the zero padding along W.
    """
    C = w_hwio.shape[2]
    WC = W * C
    w = w_hwio.astype(jnp.float32)
    bands = []
    for di in range(3):
        m = jnp.zeros((WC, WC), jnp.float32)
        for dj in range(3):
            shift = dj - 1
            # sel[a, b] = 1 iff a == b + shift
            sel = jnp.eye(W, W, k=-shift, dtype=jnp.float32)
            m = m + jnp.einsum("ab,ij->aibj", sel, w[di, dj]).reshape(WC, WC)
        bands.append(m)
    return jnp.stack(bands, axis=0)


def _block_kernel(x_ref, w1_ref, w2_ref, o_ref, pad_ref, acc_ref):
    # x_ref  : (1, H, W*C)     unpadded input row-slab (one batch element)
    # w*_ref : (3, W*C, W*C)   banded conv weights (one band per row tap)
    # o_ref  : (1, H, W*C)     output row-slab
    # pad_ref: (H+2, W*C)      H-padded scratch, reused for both convs
    # acc_ref: (H, W*C) f32    matmul accumulator
    H = o_ref.shape[1]
    WC = o_ref.shape[2]

    x = x_ref[0].astype(jnp.float32)          # aligned, lane-dense read

    # Zero only the two halo rows; the interior is fully overwritten each step.
    zrow = jnp.zeros((1, WC), jnp.float32)
    pad_ref[0:1, :] = zrow
    pad_ref[H + 1:H + 2, :] = zrow

    def conv(w_ref):
        acc_ref[...] = jnp.dot(pad_ref[0:H, :], w_ref[0],
                               preferred_element_type=jnp.float32)
        acc_ref[...] += jnp.dot(pad_ref[1:H + 1, :], w_ref[1],
                                preferred_element_type=jnp.float32)
        acc_ref[...] += jnp.dot(pad_ref[2:H + 2, :], w_ref[2],
                                preferred_element_type=jnp.float32)
        return acc_ref[...]

    # conv1
    pad_ref[1:H + 1, :] = x
    out1 = conv(w1_ref)

    # exact GELU (torch.nn.GELU default): 0.5 * x * (1 + erf(x / sqrt(2)))
    out1 = 0.5 * out1 * (1.0 + lax.erf(out1 * (1.0 / math.sqrt(2.0))))

    # conv2 — reuse the same row-padded scratch; halo rows are still zero.
    pad_ref[1:H + 1, :] = out1
    out2 = conv(w2_ref)

    # residual add from the aligned, unpadded input
    o_ref[0] = (out2 + x).astype(o_ref.dtype)


def depthwise_separable_res_block(x_nchw, w1_hwio, w2_hwio):
    """x_nchw: (N, C, H, W) float32. Returns (N, C, H, W) float32."""
    N, C, H, W = x_nchw.shape
    WC = W * C

    # NCHW -> NHWC -> (N, H, W*C) row slabs (lane dim = W*C).
    x_rows = jnp.transpose(x_nchw, (0, 2, 3, 1)).reshape(N, H, WC)

    wb1 = _band_weights(w1_hwio, W)           # (3, WC, WC)
    wb2 = _band_weights(w2_hwio, W)

    out_rows = pl.pallas_call(
        _block_kernel,
        out_shape=jax.ShapeDtypeStruct((N, H, WC), x_rows.dtype),
        grid_spec=pltpu.PrefetchScalarGridSpec(
            num_scalar_prefetch=0,
            grid=(N,),
            in_specs=[
                pl.BlockSpec((1, H, WC), lambda n: (n, 0, 0)),
                pl.BlockSpec((3, WC, WC), lambda n: (0, 0, 0)),
                pl.BlockSpec((3, WC, WC), lambda n: (0, 0, 0)),
            ],
            out_specs=pl.BlockSpec((1, H, WC), lambda n: (n, 0, 0)),
            scratch_shapes=[
                pltpu.VMEM((H + 2, WC), jnp.float32),   # row-padded slab
                pltpu.VMEM((H, WC), jnp.float32),       # f32 accumulator
            ],
        ),
        compiler_params=pltpu.CompilerParams(
            dimension_semantics=("parallel",)),
    )(x_rows, wb1, wb2)

    return jnp.transpose(out_rows.reshape(N, H, W, C), (0, 3, 1, 2))


def _reference(x_nchw, w1_hwio, w2_hwio):
    """Pure-JAX reference (XLA convs) reproducing the PyTorch forward."""
    x = jnp.transpose(x_nchw, (0, 2, 3, 1))
    dn = ("NHWC", "HWIO", "NHWC")
    o = lax.conv_general_dilated(x, w1_hwio, (1, 1), "SAME",
                                 dimension_numbers=dn)
    o = 0.5 * o * (1.0 + lax.erf(o / jnp.sqrt(jnp.float32(2.0))))
    o = lax.conv_general_dilated(o, w2_hwio, (1, 1), "SAME",
                                 dimension_numbers=dn)
    o = o + x
    return jnp.transpose(o, (0, 3, 1, 2))


if __name__ == "__main__":
    # Small shapes consistent with the module: batch=2, channels=4, spatial=16.
    N, C, H, W = 2, 4, 16, 16

    key = jax.random.PRNGKey(0)
    k_x, k_w1, k_w2 = jax.random.split(key, 3)

    x = jax.random.normal(k_x, (N, C, H, W), dtype=jnp.float32)
    # Deterministic synthetic HWIO weights, kaiming-ish scale (fan_in = C*3*3).
    scale = 1.0 / math.sqrt(C * 3 * 3)
    w1 = jax.random.normal(k_w1, (3, 3, C, C), dtype=jnp.float32) * scale
    w2 = jax.random.normal(k_w2, (3, 3, C, C), dtype=jnp.float32) * scale

    out = depthwise_separable_res_block(x, w1, w2)
    out = jax.block_until_ready(out)

    ref = jax.block_until_ready(_reference(x, w1, w2))

    assert out.shape == (N, C, H, W), out.shape
    assert jnp.allclose(out, ref, atol=1e-4, rtol=1e-4), (
        float(jnp.max(jnp.abs(out - ref))))

    print("KERNEL_OK")
</pallas_src>

<mosaic_0001>
module attributes {stable_mosaic.version = 11 : i64} {
  func.func @_block_kernel(%arg0: i32, %arg1: memref<1x16x64xf32, #tpu.memory_space<vmem>>, %arg2: memref<3x64x64xf32, #tpu.memory_space<vmem>>, %arg3: memref<3x64x64xf32, #tpu.memory_space<vmem>>, %arg4: memref<1x16x64xf32, #tpu.memory_space<vmem>>, %arg5: memref<18x64xf32, #tpu.memory_space<vmem>>, %arg6: memref<16x64xf32, #tpu.memory_space<vmem>>) attributes {dimension_semantics = [#tpu.dimension_semantics<parallel>], iteration_bounds = array<i64: 2>, scalar_prefetch = 0 : i64, scratch_operands = 2 : i64, tpu.core_type = #tpu.core_type<tc>, window_params = [{transform_indices = @transform_0, window_bounds = array<i64: 1, 16, 64>}, {pipeline_mode = #tpu.pipeline_mode<synchronous>, transform_indices = @transform_1, window_bounds = array<i64: 3, 64, 64>}, {pipeline_mode = #tpu.pipeline_mode<synchronous>, transform_indices = @transform_2, window_bounds = array<i64: 3, 64, 64>}, {transform_indices = @transform_3, window_bounds = array<i64: 1, 16, 64>}]} {
    %c0 = arith.constant 0 : index
    %c0_0 = arith.constant 0 : index
    %c0_1 = arith.constant 0 : index
    %0 = vector.load %arg1[%c0, %c0_0, %c0_1] : memref<1x16x64xf32, #tpu.memory_space<vmem>>, vector<1x16x64xf32>
    %1 = vector.shape_cast %0 : vector<1x16x64xf32> to vector<16x64xf32>
    %cst = arith.constant 0.000000e+00 : f32
    %2 = vector.broadcast %cst : f32 to vector<1x64xf32>
    %c0_2 = arith.constant 0 : index
    %c0_3 = arith.constant 0 : index
    %3 = vector.load %arg5[%c0_2, %c0_3] : memref<18x64xf32, #tpu.memory_space<vmem>>, vector<1x64xf32>
    tpu.vector_store %arg5[%c0_2, %c0_3], %2 {strides = array<i32>} : memref<18x64xf32, #tpu.memory_space<vmem>>, vector<1x64xf32>,
    %c17 = arith.constant 17 : index
    %c0_4 = arith.constant 0 : index
    %4 = vector.load %arg5[%c17, %c0_4] : memref<18x64xf32, #tpu.memory_space<vmem>>, vector<1x64xf32>
    tpu.vector_store %arg5[%c17, %c0_4], %2 {strides = array<i32>} : memref<18x64xf32, #tpu.memory_space<vmem>>, vector<1x64xf32>,
    %c1 = arith.constant 1 : index
    %c0_5 = arith.constant 0 : index
    %5 = vector.load %arg5[%c1, %c0_5] : memref<18x64xf32, #tpu.memory_space<vmem>>, vector<16x64xf32>
    tpu.vector_store %arg5[%c1, %c0_5], %1 {strides = array<i32>} : memref<18x64xf32, #tpu.memory_space<vmem>>, vector<16x64xf32>,
    %c0_6 = arith.constant 0 : index
    %c0_7 = arith.constant 0 : index
    %6 = vector.load %arg5[%c0_6, %c0_7] : memref<18x64xf32, #tpu.memory_space<vmem>>, vector<16x64xf32>
    %c0_8 = arith.constant 0 : index
    %c0_9 = arith.constant 0 : index
    %c0_10 = arith.constant 0 : index
    %7 = vector.load %arg2[%c0_8, %c0_9, %c0_10] : memref<3x64x64xf32, #tpu.memory_space<vmem>>, vector<1x64x64xf32>
    %8 = vector.shape_cast %7 : vector<1x64x64xf32> to vector<64x64xf32>
    %cst_11 = arith.constant dense<0.000000e+00> : vector<16x64xf32>
    %9 = tpu.matmul %6, %8, %cst_11 {dimension_numbers = #tpu.dot_dimension_numbers<[1], [0], [0], [1], [0, 0, 1, 1], [], []>} : vector<16x64xf32>, vector<64x64xf32>, vector<16x64xf32> -> vector<16x64xf32>
    %c0_12 = arith.constant 0 : index
    %c0_13 = arith.constant 0 : index
    %10 = vector.load %arg6[%c0_12, %c0_13] : memref<16x64xf32, #tpu.memory_space<vmem>>, vector<16x64xf32>
    tpu.vector_store %arg6[%c0_12, %c0_13], %9 {strides = array<i32>} : memref<16x64xf32, #tpu.memory_space<vmem>>, vector<16x64xf32>,
    %c0_14 = arith.constant 0 : index
    %c0_15 = arith.constant 0 : index
    %11 = vector.load %arg6[%c0_14, %c0_15] : memref<16x64xf32, #tpu.memory_space<vmem>>, vector<16x64xf32>
    %c1_16 = arith.constant 1 : index
    %c0_17 = arith.constant 0 : index
    %12 = vector.load %arg5[%c1_16, %c0_17] : memref<18x64xf32, #tpu.memory_space<vmem>>, vector<16x64xf32>
    %c1_18 = arith.constant 1 : index
    %c0_19 = arith.constant 0 : index
    %c0_20 = arith.constant 0 : index
    %13 = vector.load %arg2[%c1_18, %c0_19, %c0_20] : memref<3x64x64xf32, #tpu.memory_space<vmem>>, vector<1x64x64xf32>
    %14 = vector.shape_cast %13 : vector<1x64x64xf32> to vector<64x64xf32>
    %cst_21 = arith.constant dense<0.000000e+00> : vector<16x64xf32>
    %15 = tpu.matmul %12, %14, %cst_21 {dimension_numbers = #tpu.dot_dimension_numbers<[1], [0], [0], [1], [0, 0, 1, 1], [], []>} : vector<16x64xf32>, vector<64x64xf32>, vector<16x64xf32> -> vector<16x64xf32>
    %16 = arith.addf %11, %15 : vector<16x64xf32>
    %c0_22 = arith.constant 0 : index
    %c0_23 = arith.constant 0 : index
    %17 = vector.load %arg6[%c0_22, %c0_23] : memref<16x64xf32, #tpu.memory_space<vmem>>, vector<16x64xf32>
    tpu.vector_store %arg6[%c0_22, %c0_23], %16 {strides = array<i32>} : memref<16x64xf32, #tpu.memory_space<vmem>>, vector<16x64xf32>,
    %c0_24 = arith.constant 0 : index
    %c0_25 = arith.constant 0 : index
    %18 = vector.load %arg6[%c0_24, %c0_25] : memref<16x64xf32, #tpu.memory_space<vmem>>, vector<16x64xf32>
    %c2 = arith.constant 2 : index
    %c0_26 = arith.constant 0 : index
    %19 = vector.load %arg5[%c2, %c0_26] : memref<18x64xf32, #tpu.memory_space<vmem>>, vector<16x64xf32>
    %c2_27 = arith.constant 2 : index
    %c0_28 = arith.constant 0 : index
    %c0_29 = arith.constant 0 : index
    %20 = vector.load %arg2[%c2_27, %c0_28, %c0_29] : memref<3x64x64xf32, #tpu.memory_space<vmem>>, vector<1x64x64xf32>
    %21 = vector.shape_cast %20 : vector<1x64x64xf32> to vector<64x64xf32>
    %cst_30 = arith.constant dense<0.000000e+00> : vector<16x64xf32>
    %22 = tpu.matmul %19, %21, %cst_30 {dimension_numbers = #tpu.dot_dimension_numbers<[1], [0], [0], [1], [0, 0, 1, 1], [], []>} : vector<16x64xf32>, vector<64x64xf32>, vector<16x64xf32> -> vector<16x64xf32>
    %23 = arith.addf %18, %22 : vector<16x64xf32>
    %c0_31 = arith.constant 0 : index
    %c0_32 = arith.constant 0 : index
    %24 = vector.load %arg6[%c0_31, %c0_32] : memref<16x64xf32, #tpu.memory_space<vmem>>, vector<16x64xf32>
    tpu.vector_store %arg6[%c0_31, %c0_32], %23 {strides = array<i32>} : memref<16x64xf32, #tpu.memory_space<vmem>>, vector<16x64xf32>,
    %c0_33 = arith.constant 0 : index
    %c0_34 = arith.constant 0 : index
    %25 = vector.load %arg6[%c0_33, %c0_34] : memref<16x64xf32, #tpu.memory_space<vmem>>, vector<16x64xf32>
    %cst_35 = arith.constant 5.000000e-01 : f32
    %26 = vector.broadcast %cst_35 : f32 to vector<16x64xf32>
    %27 = arith.mulf %26, %25 : vector<16x64xf32>
    %cst_36 = arith.constant 0.707106769 : f32
    %28 = vector.broadcast %cst_36 : f32 to vector<16x64xf32>
    %29 = arith.mulf %25, %28 : vector<16x64xf32>
    %30 = math.erf %29 : vector<16x64xf32>
    %cst_37 = arith.constant 1.000000e+00 : f32
    %31 = vector.broadcast %cst_37 : f32 to vector<16x64xf32>
    %32 = arith.addf %31, %30 : vector<16x64xf32>
    %33 = arith.mulf %27, %32 : vector<16x64xf32>
    %c1_38 = arith.constant 1 : index
    %c0_39 = arith.constant 0 : index
    %34 = vector.load %arg5[%c1_38, %c0_39] : memref<18x64xf32, #tpu.memory_space<vmem>>, vector<16x64xf32>
    tpu.vector_store %arg5[%c1_38, %c0_39], %33 {strides = array<i32>} : memref<18x64xf32, #tpu.memory_space<vmem>>, vector<16x64xf32>,
    %c0_40 = arith.constant 0 : index
    %c0_41 = arith.constant 0 : index
    %35 = vector.load %arg5[%c0_40, %c0_41] : memref<18x64xf32, #tpu.memory_space<vmem>>, vector<16x64xf32>
    %c0_42 = arith.constant 0 : index
    %c0_43 = arith.constant 0 : index
    %c0_44 = arith.constant 0 : index
    %36 = vector.load %arg3[%c0_42, %c0_43, %c0_44] : memref<3x64x64xf32, #tpu.memory_space<vmem>>, vector<1x64x64xf32>
    %37 = vector.shape_cast %36 : vector<1x64x64xf32> to vector<64x64xf32>
    %cst_45 = arith.constant dense<0.000000e+00> : vector<16x64xf32>
    %38 = tpu.matmul %35, %37, %cst_45 {dimension_numbers = #tpu.dot_dimension_numbers<[1], [0], [0], [1], [0, 0, 1, 1], [], []>} : vector<16x64xf32>, vector<64x64xf32>, vector<16x64xf32> -> vector<16x64xf32>
    %c0_46 = arith.constant 0 : index
    %c0_47 = arith.constant 0 : index
    %39 = vector.load %arg6[%c0_46, %c0_47] : memref<16x64xf32, #tpu.memory_space<vmem>>, vector<16x64xf32>
    tpu.vector_store %arg6[%c0_46, %c0_47], %38 {strides = array<i32>} : memref<16x64xf32, #tpu.memory_space<vmem>>, vector<16x64xf32>,
    %c0_48 = arith.constant 0 : index
    %c0_49 = arith.constant 0 : index
    %40 = vector.load %arg6[%c0_48, %c0_49] : memref<16x64xf32, #tpu.memory_space<vmem>>, vector<16x64xf32>
    %c1_50 = arith.constant 1 : index
    %c0_51 = arith.constant 0 : index
    %41 = vector.load %arg5[%c1_50, %c0_51] : memref<18x64xf32, #tpu.memory_space<vmem>>, vector<16x64xf32>
    %c1_52 = arith.constant 1 : index
    %c0_53 = arith.constant 0 : index
    %c0_54 = arith.constant 0 : index
    %42 = vector.load %arg3[%c1_52, %c0_53, %c0_54] : memref<3x64x64xf32, #tpu.memory_space<vmem>>, vector<1x64x64xf32>
    %43 = vector.shape_cast %42 : vector<1x64x64xf32> to vector<64x64xf32>
    %cst_55 = arith.constant dense<0.000000e+00> : vector<16x64xf32>
    %44 = tpu.matmul %41, %43, %cst_55 {dimension_numbers = #tpu.dot_dimension_numbers<[1], [0], [0], [1], [0, 0, 1, 1], [], []>} : vector<16x64xf32>, vector<64x64xf32>, vector<16x64xf32> -> vector<16x64xf32>
    %45 = arith.addf %40, %44 : vector<16x64xf32>
    %c0_56 = arith.constant 0 : index
    %c0_57 = arith.constant 0 : index
    %46 = vector.load %arg6[%c0_56, %c0_57] : memref<16x64xf32, #tpu.memory_space<vmem>>, vector<16x64xf32>
    tpu.vector_store %arg6[%c0_56, %c0_57], %45 {strides = array<i32>} : memref<16x64xf32, #tpu.memory_space<vmem>>, vector<16x64xf32>,
    %c0_58 = arith.constant 0 : index
    %c0_59 = arith.constant 0 : index
    %47 = vector.load %arg6[%c0_58, %c0_59] : memref<16x64xf32, #tpu.memory_space<vmem>>, vector<16x64xf32>
    %c2_60 = arith.constant 2 : index
    %c0_61 = arith.constant 0 : index
    %48 = vector.load %arg5[%c2_60, %c0_61] : memref<18x64xf32, #tpu.memory_space<vmem>>, vector<16x64xf32>
    %c2_62 = arith.constant 2 : index
    %c0_63 = arith.constant 0 : index
    %c0_64 = arith.constant 0 : index
    %49 = vector.load %arg3[%c2_62, %c0_63, %c0_64] : memref<3x64x64xf32, #tpu.memory_space<vmem>>, vector<1x64x64xf32>
    %50 = vector.shape_cast %49 : vector<1x64x64xf32> to vector<64x64xf32>
    %cst_65 = arith.constant dense<0.000000e+00> : vector<16x64xf32>
    %51 = tpu.matmul %48, %50, %cst_65 {dimension_numbers = #tpu.dot_dimension_numbers<[1], [0], [0], [1], [0, 0, 1, 1], [], []>} : vector<16x64xf32>, vector<64x64xf32>, vector<16x64xf32> -> vector<16x64xf32>
    %52 = arith.addf %47, %51 : vector<16x64xf32>
    %c0_66 = arith.constant 0 : index
    %c0_67 = arith.constant 0 : index
    %53 = vector.load %arg6[%c0_66, %c0_67] : memref<16x64xf32, #tpu.memory_space<vmem>>, vector<16x64xf32>
    tpu.vector_store %arg6[%c0_66, %c0_67], %52 {strides = array<i32>} : memref<16x64xf32, #tpu.memory_space<vmem>>, vector<16x64xf32>,
    %c0_68 = arith.constant 0 : index
    %c0_69 = arith.constant 0 : index
    %54 = vector.load %arg6[%c0_68, %c0_69] : memref<16x64xf32, #tpu.memory_space<vmem>>, vector<16x64xf32>
    %55 = arith.addf %54, %1 : vector<16x64xf32>
    %c0_70 = arith.constant 0 : index
    %c0_71 = arith.constant 0 : index
    %c0_72 = arith.constant 0 : index
    %56 = vector.load %arg4[%c0_70, %c0_71, %c0_72] : memref<1x16x64xf32, #tpu.memory_space<vmem>>, vector<1x16x64xf32>
    %57 = vector.shape_cast %56 : vector<1x16x64xf32> to vector<16x64xf32>
    %58 = vector.shape_cast %55 : vector<16x64xf32> to vector<1x16x64xf32>
    tpu.vector_store %arg4[%c0_70, %c0_71, %c0_72], %58 {strides = array<i32>} : memref<1x16x64xf32, #tpu.memory_space<vmem>>, vector<1x16x64xf32>,
    return
  }
  func.func @transform_0(%arg0: i32) -> (i32, i32, i32) {
    %c0_i32 = arith.constant 0 : i32
    %c0_i32_0 = arith.constant 0 : i32
    %c0_i32_1 = arith.constant 0 : i32
    return %arg0, %c0_i32, %c0_i32_0 : i32, i32, i32
  }
  func.func @transform_1(%arg0: i32) -> (i32, i32, i32) {
    %c0_i32 = arith.constant 0 : i32
    %c0_i32_0 = arith.constant 0 : i32
    %c0_i32_1 = arith.constant 0 : i32
    %c0_i32_2 = arith.constant 0 : i32
    return %c0_i32, %c0_i32_0, %c0_i32_1 : i32, i32, i32
  }
  func.func @transform_2(%arg0: i32) -> (i32, i32, i32) {
    %c0_i32 = arith.constant 0 : i32
    %c0_i32_0 = arith.constant 0 : i32
    %c0_i32_1 = arith.constant 0 : i32
    %c0_i32_2 = arith.constant 0 : i32
    return %c0_i32, %c0_i32_0, %c0_i32_1 : i32, i32, i32
  }
  func.func @transform_3(%arg0: i32) -> (i32, i32, i32) {
    %c0_i32 = arith.constant 0 : i32
    %c0_i32_0 = arith.constant 0 : i32
    %c0_i32_1 = arith.constant 0 : i32
    return %arg0, %c0_i32, %c0_i32_0 : i32, i32, i32
  }
}

</mosaic_0001>

<llo_original>
// kernel: tpu_custom_call.1
$region0: #{tpu_custom_call.1}
  #allocation0 [shape = 'u32[]', space=smem, size = 0x4, offset = 0x4, fixed_abs, tag = 'smem constant byte address 0x4 - core index']
  #allocation1 [shape = 'u32[144,128]{1,0:T(1,128)}', space=vmem, size = 0x12000, scoped, tag = 'internal scratch']
  #allocation2 [shape = 'f32[18,64]{1,0:T(8,128)}', space=vmem, size = 0x3000, scoped, tag = 'scratch operand']
  #allocation3 [shape = 'f32[16,64]{1,0:T(8,128)}', space=vmem, size = 0x2000, scoped, tag = 'scratch operand']
  %s0 = inlined_call_operand.hbm [shape: f32[2,16,64], index: 0, kind: input, shape index: {}]
  %s1 = inlined_call_operand.hbm [shape: f32[3,64,64], index: 1, kind: input, shape index: {}]
  %s2 = inlined_call_operand.hbm [shape: f32[3,64,64], index: 2, kind: input, shape index: {}]
  %s3 = inlined_call_operand.hbm [shape: f32[2,16,64], index: 3, kind: output, shape index: {}]
  %s4 = sld [smem:[#allocation0]]
  $region57: #{tpu_custom_call.1} parent=0
    _
  %s6 = ssub.s32 1, %s4
  %s7 = scalar_select 0, %s6, %s4
  $region1: #{tpu_custom_call.1} parent=0
    #allocation4 [shape = 'u8[16384]{0}', space=vmem, size = 0x4000, scoped, tag = 'input window, operand 0']
    #allocation5 [shape = 's32[2]{0}', space=sflag, size = 0x8, scoped, tag = 'scoped memory for tpu_custom_call.1']
    #allocation6 [shape = 's32[2]{0}', space=sflag, size = 0x8, scoped, tag = 'scoped memory for tpu_custom_call.1']
    #allocation7 [shape = 'u8[98304]{0}', space=vmem, size = 0x18000, scoped, tag = 'input window, operand 1, single buffered']
    #allocation8 [shape = 's32[1]{0}', space=sflag, size = 0x4, scoped, tag = 'scoped memory for tpu_custom_call.1']
    #allocation9 [shape = 'u8[98304]{0}', space=vmem, size = 0x18000, scoped, tag = 'input window, operand 2, single buffered']
    #allocation10 [shape = 'u8[16384]{0}', space=vmem, size = 0x4000, scoped, tag = 'output window, operand 0']
    %8 = vsyncpa [#allocation5], 0
    %s9 = scalar_lea.sflag [#allocation5], 1
    %10 = vsyncpa %s9, 0
    %11 = vsyncpa [#allocation8], 0
    %12 = vsyncpa [#allocation6], 0
    %s13 = scalar_lea.sflag [#allocation6], 1
    %14 = vsyncpa %s13, 0
    loop: start=0, step=1, limit=4
    $region2: #{tpu_custom_call.1} parent=1 // loop_pre_header
      _
    $region3: #{tpu_custom_call.1} parent=1 // loop_header
      %s16 = sphi 0, %s20
      %p17 = scmp.ge.s32.totalorder %s16, 4
      %s26 = sphi 0, %s28
      %s29 = sphi 0, %s26
      %s30 = sphi 0, %s29
      %s46 = sphi 0, %s30
      %s50 = sphi 0, %s50
      %s52 = sphi 0, %s50
      %s53 = sphi 0, %s52
      %s67 = sphi 0, %s53
      %s71 = sphi 0, %s71
      %s73 = sphi 0, %s71
      %s74 = sphi 0, %s73
      %s88 = sphi 0, %s74
      %s94 = sphi 0, %s96
      %s97 = sphi 0, %s94
      %s98 = sphi 0, %s97
      %s114 = sphi 0, %s98
    $region4: #{tpu_custom_call.1} parent=1 // loop_header_branch
      %19 = sbr.rel (%p17) target = $region8
    $region5: #{tpu_custom_call.1} parent=1 // loop_body
      %s21 = ssub.s32 %s16, 1
      %s22 = ssub.s32 %s16, 2
      %s23 = sadd.s32 %s16, 1
      %s24 = ssub.s32 %s16, %s23
      %p25 = scmp.eq.s32.totalorder %s24, 0
      %s27 = sadd.s32 %s26, 1
      %s28 = scalar_select %p25, %s26, %s27
      %p31 = pneg %p25
      %p32 = scmp.eq.s32.totalorder %s16, 1
      %p33 = por %p31, %p32
      %p34 = scmp.ne.s32.totalorder %s26, %s29
      %p35 = scmp.eq.s32.totalorder %s16, 0
      %p36 = por %p34, %p35
      %p37 = scmp.ne.s32.totalorder %s26, %s29
      %p38 = scmp.eq.s32.totalorder %s21, 1
      %p39 = por %p37, %p38
      %p40 = scmp.ne.s32.totalorder %s29, %s30
      %p41 = scmp.eq.s32.totalorder %s21, 0
      %p42 = por %p40, %p41
      %p43 = scmp.ne.s32.totalorder %s29, %s30
      %p44 = scmp.eq.s32.totalorder %s22, 1
      %p45 = por %p43, %p44
      %p47 = scmp.ne.s32.totalorder %s30, %s46
      %p48 = scmp.eq.s32.totalorder %s22, 0
      %p49 = por %p47, %p48
      %s51 = sadd.s32 %s50, 1
      %p54 = scmp.eq.s32.totalorder %s16, 1
      %p55 = scmp.ne.s32.totalorder %s50, %s52
      %p56 = scmp.eq.s32.totalorder %s16, 0
      %p57 = por %p55, %p56
      %p58 = scmp.ne.s32.totalorder %s50, %s52
      %p59 = scmp.eq.s32.totalorder %s21, 1
      %p60 = por %p58, %p59
      %p61 = scmp.ne.s32.totalorder %s52, %s53
      %p62 = scmp.eq.s32.totalorder %s21, 0
      %p63 = por %p61, %p62
      %p64 = scmp.ne.s32.totalorder %s52, %s53
      %p65 = scmp.eq.s32.totalorder %s22, 1
      %p66 = por %p64, %p65
      %p68 = scmp.ne.s32.totalorder %s53, %s67
      %p69 = scmp.eq.s32.totalorder %s22, 0
      %p70 = por %p68, %p69
      %s72 = sadd.s32 %s71, 1
      %p75 = scmp.eq.s32.totalorder %s16, 1
      %p76 = scmp.ne.s32.totalorder %s71, %s73
      %p77 = scmp.eq.s32.totalorder %s16, 0
      %p78 = por %p76, %p77
      %p79 = scmp.ne.s32.totalorder %s71, %s73
      %p80 = scmp.eq.s32.totalorder %s21, 1
      %p81 = por %p79, %p80
      %p82 = scmp.ne.s32.totalorder %s73, %s74
      %p83 = scmp.eq.s32.totalorder %s21, 0
      %p84 = por %p82, %p83
      %p85 = scmp.ne.s32.totalorder %s73, %s74
      %p86 = scmp.eq.s32.totalorder %s22, 1
      %p87 = por %p85, %p86
      %p89 = scmp.ne.s32.totalorder %s74, %s88
      %p90 = scmp.eq.s32.totalorder %s22, 0
      %p91 = por %p89, %p90
      %s92 = ssub.s32 %s16, %s23
      %p93 = scmp.eq.s32.totalorder %s92, 0
      %s95 = sadd.s32 %s94, 1
      %s96 = scalar_select %p93, %s94, %s95
      %p99 = pneg %p93
      %p100 = scmp.eq.s32.totalorder %s16, 1
      %p101 = por %p99, %p100
      %p102 = scmp.ne.s32.totalorder %s94, %s97
      %p103 = scmp.eq.s32.totalorder %s16, 0
      %p104 = por %p102, %p103
      %p105 = scmp.ne.s32.totalorder %s94, %s97
      %p106 = scmp.eq.s32.totalorder %s21, 1
      %p107 = por %p105, %p106
      %p108 = scmp.ne.s32.totalorder %s97, %s98
      %p109 = scmp.eq.s32.totalorder %s21, 0
      %p110 = por %p108, %p109
      %p111 = scmp.ne.s32.totalorder %s97, %s98
      %p112 = scmp.eq.s32.totalorder %s22, 1
      %p113 = por %p111, %p112
      %p115 = scmp.ne.s32.totalorder %s98, %s114
      %p116 = scmp.eq.s32.totalorder %s22, 0
      %p117 = por %p115, %p116
      %p118 = scmp.le.s32.totalorder 1, %s16
      %p119 = scmp.lt.s32.totalorder %s16, 3
      %p120 = pnand %p118, %p119
      %p121 = pneg %p120
      // Predicated region
      $region9: #{tpu_custom_call.1} parent=5 // pred_check
        _
      $region10: #{tpu_custom_call.1} parent=5 // pred_check_branch
        %123 = sbr.rel (%p120) target = $region12
      $region11: #{tpu_custom_call.1} parent=5 // pred_region
        %s124 = ssub.s32 %s16, 1
        // Predicated region
        $region13: #{tpu_custom_call.1} parent=11 // pred_check
          %p125 = pneg %p63
        $region14: #{tpu_custom_call.1} parent=11 // pred_check_branch
          %127 = sbr.rel (%p125) target = $region16
        $region15: #{tpu_custom_call.1} parent=11 // pred_region
          %s129 = ssub.s32 3072, 3072
          %130 = vsyncadd [#allocation8], %s129
          %s131 = sshll.u32 [#allocation7], 4
          %s132 = int_to_ptr.vmem [resolvable:$true] %s131
          %137 = dma.hbm_to_vmem [thread:$0]  %s1, 3072, %s132, [#allocation8], 128, 128, 8
        $region16: #{tpu_custom_call.1} parent=11 // pred_fallthru
          _
        // Predicated region
        $region17: #{tpu_custom_call.1} parent=11 // pred_check
          %p138 = pneg %p84
        $region18: #{tpu_custom_call.1} parent=11 // pred_check_branch
          %140 = sbr.rel (%p138) target = $region20
        $region19: #{tpu_custom_call.1} parent=11 // pred_region
          %s142 = ssub.s32 3072, 3072
          %143 = vsyncadd [#allocation8], %s142
          %s144 = sshll.u32 [#allocation9], 4
          %s145 = int_to_ptr.vmem [resolvable:$true] %s144
          %150 = dma.hbm_to_vmem [thread:$0]  %s2, 3072, %s145, [#allocation8], 128, 128, 8
        $region20: #{tpu_custom_call.1} parent=11 // pred_fallthru
          _
      $region12: #{tpu_custom_call.1} parent=5 // pred_fallthru
        _
      %p151 = scmp.lt.s32.totalorder %s16, 2
      // Predicated region
      $region21: #{tpu_custom_call.1} parent=5 // pred_check
        %p152 = pneg %p151
      $region22: #{tpu_custom_call.1} parent=5 // pred_check_branch
        %154 = sbr.rel (%p152) target = $region24
      $region23: #{tpu_custom_call.1} parent=5 // pred_region
        // Predicated region
        $region25: #{tpu_custom_call.1} parent=23 // pred_check
          %p155 = pneg %p36
        $region26: #{tpu_custom_call.1} parent=23 // pred_check_branch
          %157 = sbr.rel (%p155) target = $region28
        $region27: #{tpu_custom_call.1} parent=23 // pred_region
          %s158 = sand.u32 %s26, 1
          %s159 = scalar_lea.sflag [#allocation5], %s158
          %s160 = sand.u32 %s26, 1
          %s161 = smul.addr %s160, 16
          %s162 = scalar_lea.vmem [#allocation4], %s161
          %s164 = ssub.s32 256, 256
          %165 = vsyncadd %s159, %s164
          %s166 = smul.addr %s16, 2
          %s167 = smul.addr %s166, 128
          %s168 = scalar_lea.hbm %s0, %s167
          %s169 = sshll.u32 %s162, 4
          %s170 = int_to_ptr.vmem [resolvable:$true] %s169
          %175 = dma.hbm_to_vmem [thread:$0]  %s168, 256, %s170, %s159, 128, 128, 8
        $region28: #{tpu_custom_call.1} parent=23 // pred_fallthru
          _
      $region24: #{tpu_custom_call.1} parent=5 // pred_fallthru
        _
      %p176 = scmp.le.s32.totalorder 1, %s16
      %p177 = scmp.lt.s32.totalorder %s16, 3
      %p178 = pnand %p176, %p177
      %p179 = pneg %p178
      // Predicated region
      $region29: #{tpu_custom_call.1} parent=5 // pred_check
        _
      $region30: #{tpu_custom_call.1} parent=5 // pred_check_branch
        %181 = sbr.rel (%p178) target = $region32
      $region31: #{tpu_custom_call.1} parent=5 // pred_region
        %s182 = ssub.s32 %s16, 1
        %s183 = sand.u32 %s29, 1
        %s184 = scalar_lea.sflag [#allocation5], %s183
        %s185 = sand.u32 %s29, 1
        %s186 = smul.addr %s185, 16
        %s187 = scalar_lea.vmem [#allocation4], %s186
        // Predicated region
        $region33: #{tpu_custom_call.1} parent=31 // pred_check
          %p188 = pneg %p42
        $region34: #{tpu_custom_call.1} parent=31 // pred_check_branch
          %190 = sbr.rel (%p188) target = $region36
        $region35: #{tpu_custom_call.1} parent=31 // pred_region
          %191 = dma.done %s184, 256
        $region36: #{tpu_custom_call.1} parent=31 // pred_fallthru
          _
        // Predicated region
        $region37: #{tpu_custom_call.1} parent=31 // pred_check
          %p192 = pneg %p63
        $region38: #{tpu_custom_call.1} parent=31 // pred_check_branch
          %194 = sbr.rel (%p192) target = $region40
        $region39: #{tpu_custom_call.1} parent=31 // pred_region
          %195 = dma.done [#allocation8], 3072
        $region40: #{tpu_custom_call.1} parent=31 // pred_fallthru
          _
        // Predicated region
        $region41: #{tpu_custom_call.1} parent=31 // pred_check
          %p196 = pneg %p84
        $region42: #{tpu_custom_call.1} parent=31 // pred_check_branch
          %198 = sbr.rel (%p196) target = $region44
        $region43: #{tpu_custom_call.1} parent=31 // pred_region
          %199 = dma.done [#allocation8], 3072
        $region44: #{tpu_custom_call.1} parent=31 // pred_fallthru
          _
        %s200 = sand.u32 %s29, 1
        %s201 = scalar_lea.sflag [#allocation5], %s200
        %s202 = sand.u32 %s29, 1
        %s203 = smul.addr %s202, 16
        %s204 = scalar_lea.vmem [#allocation4], %s203
        %p205 = pneg %p42
        %p206 = pneg %p39
        %p207 = pneg %p63
        %p208 = pneg %p60
        %p209 = pneg %p84
        %p210 = pneg %p81
        %p211 = pneg %p110
        %p212 = pneg %p107
        %s213 = sand.u32 %s97, 1
        %s214 = scalar_lea.sflag [#allocation6], %s213
        %s215 = sand.u32 %s97, 1
        %s216 = smul.addr %s215, 16
        %s217 = scalar_lea.vmem [#allocation10], %s216
        %v218 = vld [vmem:[%s187] sm:$0xff]
        %v219 = vld [vmem:[%s187 + $0x8] sm:$0xff]
        %vm220 = vcmask 516096
        %221 = vst.msk [vmem:[#allocation2] sm:$0x1] %vm220, 0.0
        %222 = vst.msk [vmem:[#allocation2 + $0x11] sm:$0x1] %vm220, 0.0
        %vm223 = vcmask 523264
        %224 = vst.msk [vmem:[#allocation2 + $0x1] sm:$0xff] %vm223, %v218
        %225 = vst.msk [vmem:[#allocation2 + $0x9] sm:$0xff] %vm223, %v219
        %v226 = vld [vmem:[#allocation2] sm:$0xff]
        %v227 = vld [vmem:[#allocation2 + $0x8] sm:$0xff]
        %v228 = vld [vmem:[#allocation7] sm:$0xff]
        %v229 = vld [vmem:[#allocation7 + $0x8] sm:$0xff]
        %v230 = vld [vmem:[#allocation7 + $0x10] sm:$0xff]
        %v231 = vld [vmem:[#allocation7 + $0x18] sm:$0xff]
        %v232 = vld [vmem:[#allocation7 + $0x20] sm:$0xff]
        %v233 = vld [vmem:[#allocation7 + $0x28] sm:$0xff]
        %v234 = vld [vmem:[#allocation7 + $0x30] sm:$0xff]
        %v235 = vld [vmem:[#allocation7 + $0x38] sm:$0xff]
        %v237 = vsel %vm223, %v226, 0
        %v240 = vsel %vm223, %v227, 0
        %242 = vmatprep.subr.mxu0 0.0
        %243 = vmatpush1.msra.mxu0 %v228
        %244 = vmatprep.subr.mxu0 0.0
        %245 = vmatpush1.msra.mxu0 %v229
        %246 = vmatprep.subr.mxu0 0.0
        %247 = vmatpush1.msra.mxu0 %v230
        %248 = vmatprep.subr.mxu0 0.0
        %249 = vmatpush1.msra.mxu0 %v231
        %250 = vmatprep.subr.mxu0 0.0
        %251 = vmatpush1.msra.mxu0 %v232
        %252 = vmatprep.subr.mxu0 0.0
        %253 = vmatpush1.msra.mxu0 %v233
        %254 = vmatprep.subr.mxu0 0.0
        %255 = vmatpush1.msra.mxu0 %v234
        %256 = vmatprep.subr.mxu0 0.0
        %257 = vmatpush1.msra.mxu0 %v235
        %258 = vmatprep.subr.mxu0 0.0
        %259 = vmatpush1.msra.mxu0 0.0
        %260 = vmatprep.subr.mxu0 0.0
        %261 = vmatpush1.msra.mxu0 0.0
        %262 = vmatprep.subr.mxu0 0.0
        %263 = vmatpush1.msra.mxu0 0.0
        %264 = vmatprep.subr.mxu0 0.0
        %265 = vmatpush1.msra.mxu0 0.0
        %266 = vmatprep.subr.mxu0 0.0
        %267 = vmatpush1.msra.mxu0 0.0
        %268 = vmatprep.subr.mxu0 0.0
        %269 = vmatpush1.msra.mxu0 0.0
        %270 = vmatprep.subr.mxu0 0.0
        %271 = vmatpush1.msra.mxu0 0.0
        %272 = vmatprep.subr.mxu0 0.0
        %273 = vmatpush1.msra.mxu0 0.0
        %274 = vmatprep.subr.mxu0 0.0
        %275 = vmatpush1.msra.mxu0 0.0
        %276 = vmatprep.subr.mxu0 0.0
        %277 = vmatpush1.msra.mxu0 0.0
        %278 = vmatprep.subr.mxu0 0.0
        %279 = vmatpush1.msra.mxu0 0.0
        %280 = vmatprep.subr.mxu0 0.0
        %281 = vmatpush1.msra.mxu0 0.0
        %282 = vmatprep.subr.mxu0 0.0
        %283 = vmatpush1.msra.mxu0 0.0
        %284 = vmatprep.subr.mxu0 0.0
        %285 = vmatpush1.msra.mxu0 0.0
        %286 = vmatprep.subr.mxu0 0.0
        %287 = vmatpush1.msra.mxu0 0.0
        %288 = vmatprep.subr.mxu0 0.0
        %289 = vmatpush1.msra.mxu0 0.0
        %290 = vmatprep.subr.mxu0 0.0
        %291 = vmatpush1.msra.mxu0 0.0
        %292 = vmatprep.subr.mxu0 0.0
        %293 = vmatpush1.msra.mxu0 0.0
        %294 = vmatprep.subr.mxu0 0.0
        %295 = vmatpush1.msra.mxu0 0.0
        %296 = vmatprep.subr.mxu0 0.0
        %297 = vmatpush1.msra.mxu0 0.0
        %298 = vmatprep.subr.mxu0 0.0
        %299 = vmatpush1.msra.mxu0 0.0
        %300 = vmatprep.subr.mxu0 0.0
        %301 = vmatpush1.msra.mxu0 0.0
        %302 = vmatprep.subr.mxu0 0.0
        %303 = vmatpush1.msra.mxu0 0.0
        %304 = vmatprep.subr.mxu0 0.0
        %305 = vmatpush1.msra.mxu0 0.0
        %306 = vmatprep.mubr.f32.mxu0 0.0
        %307 = vmatmul.mubr.f32.gmra.mrb[0].mxu0 %v237
        %v308 = vpop.f32.mrb[0].mxu0
        %v309 = vadd.f32 0.0, %v308
        %v310 = vpop.f32.mrb[0].mxu0
        %311 = vmatprep.mubr.f32.mxu0 0.0
        %312 = vmatmul.mubr.f32.gmra.mrb[0].mxu0 %v240
        %v313 = vpop.f32.mrb[0].mxu0
        %v314 = vadd.f32 0.0, %v313
        %v315 = vpop.f32.mrb[0].mxu0
        %316 = vdwg.mxu0
        %317 = vst.msk [vmem:[#allocation3] sm:$0xff] %vm223, %v309
        %318 = vst.msk [vmem:[#allocation3 + $0x8] sm:$0xff] %vm223, %v314
        %v319 = vld [vmem:[#allocation3] sm:$0xff]
        %v320 = vld [vmem:[#allocation3 + $0x8] sm:$0xff]
        %v321 = vld [vmem:[#allocation2 + $0x1] sm:$0xff]
        %v322 = vld [vmem:[#allocation2 + $0x9] sm:$0xff]
        %s323 = scalar_lea.vmem [#allocation7], 64
        %v324 = vld [vmem:[%s323] sm:$0xff]
        %v325 = vld [vmem:[%s323 + $0x8] sm:$0xff]
        %v326 = vld [vmem:[%s323 + $0x10] sm:$0xff]
        %v327 = vld [vmem:[%s323 + $0x18] sm:$0xff]
        %v328 = vld [vmem:[%s323 + $0x20] sm:$0xff]
        %v329 = vld [vmem:[%s323 + $0x28] sm:$0xff]
        %v330 = vld [vmem:[%s323 + $0x30] sm:$0xff]
        %v331 = vld [vmem:[%s323 + $0x38] sm:$0xff]
        %v333 = vsel %vm223, %v321, 0
        %v336 = vsel %vm223, %v322, 0
        %338 = vmatprep.subr.mxu0 0.0
        %339 = vmatpush1.msra.mxu0 %v324
        %340 = vmatprep.subr.mxu0 0.0
        %341 = vmatpush1.msra.mxu0 %v325
        %342 = vmatprep.subr.mxu0 0.0
        %343 = vmatpush1.msra.mxu0 %v326
        %344 = vmatprep.subr.mxu0 0.0
        %345 = vmatpush1.msra.mxu0 %v327
        %346 = vmatprep.subr.mxu0 0.0
        %347 = vmatpush1.msra.mxu0 %v328
        %348 = vmatprep.subr.mxu0 0.0
        %349 = vmatpush1.msra.mxu0 %v329
        %350 = vmatprep.subr.mxu0 0.0
        %351 = vmatpush1.msra.mxu0 %v330
        %352 = vmatprep.subr.mxu0 0.0
        %353 = vmatpush1.msra.mxu0 %v331
        %354 = vmatprep.subr.mxu0 0.0
        %355 = vmatpush1.msra.mxu0 0.0
        %356 = vmatprep.subr.mxu0 0.0
        %357 = vmatpush1.msra.mxu0 0.0
        %358 = vmatprep.subr.mxu0 0.0
        %359 = vmatpush1.msra.mxu0 0.0
        %360 = vmatprep.subr.mxu0 0.0
        %361 = vmatpush1.msra.mxu0 0.0
        %362 = vmatprep.subr.mxu0 0.0
        %363 = vmatpush1.msra.mxu0 0.0
        %364 = vmatprep.subr.mxu0 0.0
        %365 = vmatpush1.msra.mxu0 0.0
        %366 = vmatprep.subr.mxu0 0.0
        %367 = vmatpush1.msra.mxu0 0.0
        %368 = vmatprep.subr.mxu0 0.0
        %369 = vmatpush1.msra.mxu0 0.0
        %370 = vmatprep.subr.mxu0 0.0
        %371 = vmatpush1.msra.mxu0 0.0
        %372 = vmatprep.subr.mxu0 0.0
        %373 = vmatpush1.msra.mxu0 0.0
        %374 = vmatprep.subr.mxu0 0.0
        %375 = vmatpush1.msra.mxu0 0.0
        %376 = vmatprep.subr.mxu0 0.0
        %377 = vmatpush1.msra.mxu0 0.0
        %378 = vmatprep.subr.mxu0 0.0
        %379 = vmatpush1.msra.mxu0 0.0
        %380 = vmatprep.subr.mxu0 0.0
        %381 = vmatpush1.msra.mxu0 0.0
        %382 = vmatprep.subr.mxu0 0.0
        %383 = vmatpush1.msra.mxu0 0.0
        %384 = vmatprep.subr.mxu0 0.0
        %385 = vmatpush1.msra.mxu0 0.0
        %386 = vmatprep.subr.mxu0 0.0
        %387 = vmatpush1.msra.mxu0 0.0
        %388 = vmatprep.subr.mxu0 0.0
        %389 = vmatpush1.msra.mxu0 0.0
        %390 = vmatprep.subr.mxu0 0.0
        %391 = vmatpush1.msra.mxu0 0.0
        %392 = vmatprep.subr.mxu0 0.0
        %393 = vmatpush1.msra.mxu0 0.0
        %394 = vmatprep.subr.mxu0 0.0
        %395 = vmatpush1.msra.mxu0 0.0
        %396 = vmatprep.subr.mxu0 0.0
        %397 = vmatpush1.msra.mxu0 0.0
        %398 = vmatprep.subr.mxu0 0.0
        %399 = vmatpush1.msra.mxu0 0.0
        %400 = vmatprep.subr.mxu0 0.0
        %401 = vmatpush1.msra.mxu0 0.0
        %402 = vmatprep.mubr.f32.mxu0 0.0
        %403 = vmatmul.mubr.f32.gmra.mrb[0].mxu0 %v333
        %v404 = vpop.f32.mrb[0].mxu0
        %v405 = vadd.f32 0.0, %v404
        %v406 = vpop.f32.mrb[0].mxu0
        %407 = vmatprep.mubr.f32.mxu0 0.0
        %408 = vmatmul.mubr.f32.gmra.mrb[0].mxu0 %v336
        %v409 = vpop.f32.mrb[0].mxu0
        %v410 = vadd.f32 0.0, %v409
        %v411 = vpop.f32.mrb[0].mxu0
        %412 = vdwg.mxu0
        %v413 = vadd.f32 %v319, %v405
        %v414 = vadd.f32 %v320, %v410
        %415 = vst.msk [vmem:[#allocation3] sm:$0xff] %vm223, %v413
        %416 = vst.msk [vmem:[#allocation3 + $0x8] sm:$0xff] %vm223, %v414
        %v417 = vld [vmem:[#allocation3] sm:$0xff]
        %v418 = vld [vmem:[#allocation3 + $0x8] sm:$0xff]
        %v419 = vld [vmem:[#allocation2 + $0x2] sm:$0xff]
        %v420 = vld [vmem:[#allocation2 + $0xa] sm:$0xff]
        %s421 = scalar_lea.vmem [#allocation7], 128
        %v422 = vld [vmem:[%s421] sm:$0xff]
        %v423 = vld [vmem:[%s421 + $0x8] sm:$0xff]
        %v424 = vld [vmem:[%s421 + $0x10] sm:$0xff]
        %v425 = vld [vmem:[%s421 + $0x18] sm:$0xff]
        %v426 = vld [vmem:[%s421 + $0x20] sm:$0xff]
        %v427 = vld [vmem:[%s421 + $0x28] sm:$0xff]
        %v428 = vld [vmem:[%s421 + $0x30] sm:$0xff]
        %v429 = vld [vmem:[%s421 + $0x38] sm:$0xff]
        %v431 = vsel %vm223, %v419, 0
        %v434 = vsel %vm223, %v420, 0
        %436 = vmatprep.subr.mxu0 0.0
        %437 = vmatpush1.msra.mxu0 %v422
        %438 = vmatprep.subr.mxu0 0.0
        %439 = vmatpush1.msra.mxu0 %v423
        %440 = vmatprep.subr.mxu0 0.0
        %441 = vmatpush1.msra.mxu0 %v424
        %442 = vmatprep.subr.mxu0 0.0
        %443 = vmatpush1.msra.mxu0 %v425
        %444 = vmatprep.subr.mxu0 0.0
        %445 = vmatpush1.msra.mxu0 %v426
        %446 = vmatprep.subr.mxu0 0.0
        %447 = vmatpush1.msra.mxu0 %v427
        %448 = vmatprep.subr.mxu0 0.0
        %449 = vmatpush1.msra.mxu0 %v428
        %450 = vmatprep.subr.mxu0 0.0
        %451 = vmatpush1.msra.mxu0 %v429
        %452 = vmatprep.subr.mxu0 0.0
        %453 = vmatpush1.msra.mxu0 0.0
        %454 = vmatprep.subr.mxu0 0.0
        %455 = vmatpush1.msra.mxu0 0.0
        %456 = vmatprep.subr.mxu0 0.0
        %457 = vmatpush1.msra.mxu0 0.0
        %458 = vmatprep.subr.mxu0 0.0
        %459 = vmatpush1.msra.mxu0 0.0
        %460 = vmatprep.subr.mxu0 0.0
        %461 = vmatpush1.msra.mxu0 0.0
        %462 = vmatprep.subr.mxu0 0.0
        %463 = vmatpush1.msra.mxu0 0.0
        %464 = vmatprep.subr.mxu0 0.0
        %465 = vmatpush1.msra.mxu0 0.0
        %466 = vmatprep.subr.mxu0 0.0
        %467 = vmatpush1.msra.mxu0 0.0
        %468 = vmatprep.subr.mxu0 0.0
        %469 = vmatpush1.msra.mxu0 0.0
        %470 = vmatprep.subr.mxu0 0.0
        %471 = vmatpush1.msra.mxu0 0.0
        %472 = vmatprep.subr.mxu0 0.0
        %473 = vmatpush1.msra.mxu0 0.0
        %474 = vmatprep.subr.mxu0 0.0
        %475 = vmatpush1.msra.mxu0 0.0
        %476 = vmatprep.subr.mxu0 0.0
        %477 = vmatpush1.msra.mxu0 0.0
        %478 = vmatprep.subr.mxu0 0.0
        %479 = vmatpush1.msra.mxu0 0.0
        %480 = vmatprep.subr.mxu0 0.0
        %481 = vmatpush1.msra.mxu0 0.0
        %482 = vmatprep.subr.mxu0 0.0
        %483 = vmatpush1.msra.mxu0 0.0
        %484 = vmatprep.subr.mxu0 0.0
        %485 = vmatpush1.msra.mxu0 0.0
        %486 = vmatprep.subr.mxu0 0.0
        %487 = vmatpush1.msra.mxu0 0.0
        %488 = vmatprep.subr.mxu0 0.0
        %489 = vmatpush1.msra.mxu0 0.0
        %490 = vmatprep.subr.mxu0 0.0
        %491 = vmatpush1.msra.mxu0 0.0
        %492 = vmatprep.subr.mxu0 0.0
        %493 = vmatpush1.msra.mxu0 0.0
        %494 = vmatprep.subr.mxu0 0.0
        %495 = vmatpush1.msra.mxu0 0.0
        %496 = vmatprep.subr.mxu0 0.0
        %497 = vmatpush1.msra.mxu0 0.0
        %498 = vmatprep.subr.mxu0 0.0
        %499 = vmatpush1.msra.mxu0 0.0
        %500 = vmatprep.mubr.f32.mxu0 0.0
        %501 = vmatmul.mubr.f32.gmra.mrb[0].mxu0 %v431
        %v502 = vpop.f32.mrb[0].mxu0
        %v503 = vadd.f32 0.0, %v502
        %v504 = vpop.f32.mrb[0].mxu0
        %505 = vmatprep.mubr.f32.mxu0 0.0
        %506 = vmatmul.mubr.f32.gmra.mrb[0].mxu0 %v434
        %v507 = vpop.f32.mrb[0].mxu0
        %v508 = vadd.f32 0.0, %v507
        %v509 = vpop.f32.mrb[0].mxu0
        %510 = vdwg.mxu0
        %v511 = vadd.f32 %v417, %v503
        %v512 = vadd.f32 %v418, %v508
        %513 = vst.msk [vmem:[#allocation3] sm:$0xff] %vm223, %v511
        %514 = vst.msk [vmem:[#allocation3 + $0x8] sm:$0xff] %vm223, %v512
        %v515 = vld [vmem:[#allocation3] sm:$0xff]
        %v516 = vld [vmem:[#allocation3 + $0x8] sm:$0xff]
        %v517 = vmul.f32 %v515, 0.5
        %v518 = vmul.f32 %v516, 0.5
        %v519 = vmul.f32 %v515, 0.70710677
        %v520 = vmul.f32 %v516, 0.70710677
        %v521 = verf.f32.pop %v519
        %v522 = verf.f32.pop %v520
        %v523 = vadd.f32 %v521, 1.0
        %v524 = vadd.f32 %v522, 1.0
        %v525 = vmul.f32 %v517, %v523
        %v526 = vmul.f32 %v518, %v524
        %527 = vst.msk [vmem:[#allocation2 + $0x1] sm:$0xff] %vm223, %v525
        %528 = vst.msk [vmem:[#allocation2 + $0x9] sm:$0xff] %vm223, %v526
        %v529 = vld [vmem:[#allocation2] sm:$0xff]
        %v530 = vld [vmem:[#allocation2 + $0x8] sm:$0xff]
        %v531 = vld [vmem:[#allocation9] sm:$0xff]
        %v532 = vld [vmem:[#allocation9 + $0x8] sm:$0xff]
        %v533 = vld [vmem:[#allocation9 + $0x10] sm:$0xff]
        %v534 = vld [vmem:[#allocation9 + $0x18] sm:$0xff]
        %v535 = vld [vmem:[#allocation9 + $0x20] sm:$0xff]
        %v536 = vld [vmem:[#allocation9 + $0x28] sm:$0xff]
        %v537 = vld [vmem:[#allocation9 + $0x30] sm:$0xff]
        %v538 = vld [vmem:[#allocation9 + $0x38] sm:$0xff]
        %v540 = vsel %vm223, %v529, 0
        %v543 = vsel %vm223, %v530, 0
        %545 = vmatprep.subr.mxu0 0.0
        %546 = vmatpush1.msra.mxu0 %v531
        %547 = vmatprep.subr.mxu0 0.0
        %548 = vmatpush1.msra.mxu0 %v532
        %549 = vmatprep.subr.mxu0 0.0
        %550 = vmatpush1.msra.mxu0 %v533
        %551 = vmatprep.subr.mxu0 0.0
        %552 = vmatpush1.msra.mxu0 %v534
        %553 = vmatprep.subr.mxu0 0.0
        %554 = vmatpush1.msra.mxu0 %v535
        %555 = vmatprep.subr.mxu0 0.0
        %556 = vmatpush1.msra.mxu0 %v536
        %557 = vmatprep.subr.mxu0 0.0
        %558 = vmatpush1.msra.mxu0 %v537
        %559 = vmatprep.subr.mxu0 0.0
        %560 = vmatpush1.msra.mxu0 %v538
        %561 = vmatprep.subr.mxu0 0.0
        %562 = vmatpush1.msra.mxu0 0.0
        %563 = vmatprep.subr.mxu0 0.0
        %564 = vmatpush1.msra.mxu0 0.0
        %565 = vmatprep.subr.mxu0 0.0
        %566 = vmatpush1.msra.mxu0 0.0
        %567 = vmatprep.subr.mxu0 0.0
        %568 = vmatpush1.msra.mxu0 0.0
        %569 = vmatprep.subr.mxu0 0.0
        %570 = vmatpush1.msra.mxu0 0.0
        %571 = vmatprep.subr.mxu0 0.0
        %572 = vmatpush1.msra.mxu0 0.0
        %573 = vmatprep.subr.mxu0 0.0
        %574 = vmatpush1.msra.mxu0 0.0
        %575 = vmatprep.subr.mxu0 0.0
        %576 = vmatpush1.msra.mxu0 0.0
        %577 = vmatprep.subr.mxu0 0.0
        %578 = vmatpush1.msra.mxu0 0.0
        %579 = vmatprep.subr.mxu0 0.0
        %580 = vmatpush1.msra.mxu0 0.0
        %581 = vmatprep.subr.mxu0 0.0
        %582 = vmatpush1.msra.mxu0 0.0
        %583 = vmatprep.subr.mxu0 0.0
        %584 = vmatpush1.msra.mxu0 0.0
        %585 = vmatprep.subr.mxu0 0.0
        %586 = vmatpush1.msra.mxu0 0.0
        %587 = vmatprep.subr.mxu0 0.0
        %588 = vmatpush1.msra.mxu0 0.0
        %589 = vmatprep.subr.mxu0 0.0
        %590 = vmatpush1.msra.mxu0 0.0
        %591 = vmatprep.subr.mxu0 0.0
        %592 = vmatpush1.msra.mxu0 0.0
        %593 = vmatprep.subr.mxu0 0.0
        %594 = vmatpush1.msra.mxu0 0.0
        %595 = vmatprep.subr.mxu0 0.0
        %596 = vmatpush1.msra.mxu0 0.0
        %597 = vmatprep.subr.mxu0 0.0
        %598 = vmatpush1.msra.mxu0 0.0
        %599 = vmatprep.subr.mxu0 0.0
        %600 = vmatpush1.msra.mxu0 0.0
        %601 = vmatprep.subr.mxu0 0.0
        %602 = vmatpush1.msra.mxu0 0.0
        %603 = vmatprep.subr.mxu0 0.0
        %604 = vmatpush1.msra.mxu0 0.0
        %605 = vmatprep.subr.mxu0 0.0
        %606 = vmatpush1.msra.mxu0 0.0
        %607 = vmatprep.subr.mxu0 0.0
        %608 = vmatpush1.msra.mxu0 0.0
        %609 = vmatprep.mubr.f32.mxu0 0.0
        %610 = vmatmul.mubr.f32.gmra.mrb[0].mxu0 %v540
        %v611 = vpop.f32.mrb[0].mxu0
        %v612 = vadd.f32 0.0, %v611
        %v613 = vpop.f32.mrb[0].mxu0
        %614 = vmatprep.mubr.f32.mxu0 0.0
        %615 = vmatmul.mubr.f32.gmra.mrb[0].mxu0 %v543
        %v616 = vpop.f32.mrb[0].mxu0
        %v617 = vadd.f32 0.0, %v616
        %v618 = vpop.f32.mrb[0].mxu0
        %619 = vdwg.mxu0
        %620 = vst.msk [vmem:[#allocation3] sm:$0xff] %vm223, %v612
        %621 = vst.msk [vmem:[#allocation3 + $0x8] sm:$0xff] %vm223, %v617
        %v622 = vld [vmem:[#allocation3] sm:$0xff]
        %v623 = vld [vmem:[#allocation3 + $0x8] sm:$0xff]
        %v624 = vld [vmem:[#allocation2 + $0x1] sm:$0xff]
        %v625 = vld [vmem:[#allocation2 + $0x9] sm:$0xff]
        %s626 = scalar_lea.vmem [#allocation9], 64
        %v627 = vld [vmem:[%s626] sm:$0xff]
        %v628 = vld [vmem:[%s626 + $0x8] sm:$0xff]
        %v629 = vld [vmem:[%s626 + $0x10] sm:$0xff]
        %v630 = vld [vmem:[%s626 + $0x18] sm:$0xff]
        %v631 = vld [vmem:[%s626 + $0x20] sm:$0xff]
        %v632 = vld [vmem:[%s626 + $0x28] sm:$0xff]
        %v633 = vld [vmem:[%s626 + $0x30] sm:$0xff]
        %v634 = vld [vmem:[%s626 + $0x38] sm:$0xff]
        %v636 = vsel %vm223, %v624, 0
        %v639 = vsel %vm223, %v625, 0
        %641 = vmatprep.subr.mxu0 0.0
        %642 = vmatpush1.msra.mxu0 %v627
        %643 = vmatprep.subr.mxu0 0.0
        %644 = vmatpush1.msra.mxu0 %v628
        %645 = vmatprep.subr.mxu0 0.0
        %646 = vmatpush1.msra.mxu0 %v629
        %647 = vmatprep.subr.mxu0 0.0
        %648 = vmatpush1.msra.mxu0 %v630
        %649 = vmatprep.subr.mxu0 0.0
        %650 = vmatpush1.msra.mxu0 %v631
        %651 = vmatprep.subr.mxu0 0.0
        %652 = vmatpush1.msra.mxu0 %v632
        %653 = vmatprep.subr.mxu0 0.0
        %654 = vmatpush1.msra.mxu0 %v633
        %655 = vmatprep.subr.mxu0 0.0
        %656 = vmatpush1.msra.mxu0 %v634
        %657 = vmatprep.subr.mxu0 0.0
        %658 = vmatpush1.msra.mxu0 0.0
        %659 = vmatprep.subr.mxu0 0.0
        %660 = vmatpush1.msra.mxu0 0.0
        %661 = vmatprep.subr.mxu0 0.0
        %662 = vmatpush1.msra.mxu0 0.0
        %663 = vmatprep.subr.mxu0 0.0
        %664 = vmatpush1.msra.mxu0 0.0
        %665 = vmatprep.subr.mxu0 0.0
        %666 = vmatpush1.msra.mxu0 0.0
        %667 = vmatprep.subr.mxu0 0.0
        %668 = vmatpush1.msra.mxu0 0.0
        %669 = vmatprep.subr.mxu0 0.0
        %670 = vmatpush1.msra.mxu0 0.0
        %671 = vmatprep.subr.mxu0 0.0
        %672 = vmatpush1.msra.mxu0 0.0
        %673 = vmatprep.subr.mxu0 0.0
        %674 = vmatpush1.msra.mxu0 0.0
        %675 = vmatprep.subr.mxu0 0.0
        %676 = vmatpush1.msra.mxu0 0.0
        %677 = vmatprep.subr.mxu0 0.0
        %678 = vmatpush1.msra.mxu0 0.0
        %679 = vmatprep.subr.mxu0 0.0
        %680 = vmatpush1.msra.mxu0 0.0
        %681 = vmatprep.subr.mxu0 0.0
        %682 = vmatpush1.msra.mxu0 0.0
        %683 = vmatprep.subr.mxu0 0.0
        %684 = vmatpush1.msra.mxu0 0.0
        %685 = vmatprep.subr.mxu0 0.0
        %686 = vmatpush1.msra.mxu0 0.0
        %687 = vmatprep.subr.mxu0 0.0
        %688 = vmatpush1.msra.mxu0 0.0
        %689 = vmatprep.subr.mxu0 0.0
        %690 = vmatpush1.msra.mxu0 0.0
        %691 = vmatprep.subr.mxu0 0.0
        %692 = vmatpush1.msra.mxu0 0.0
        %693 = vmatprep.subr.mxu0 0.0
        %694 = vmatpush1.msra.mxu0 0.0
        %695 = vmatprep.subr.mxu0 0.0
        %696 = vmatpush1.msra.mxu0 0.0
        %697 = vmatprep.subr.mxu0 0.0
        %698 = vmatpush1.msra.mxu0 0.0
        %699 = vmatprep.subr.mxu0 0.0
        %700 = vmatpush1.msra.mxu0 0.0
        %701 = vmatprep.subr.mxu0 0.0
        %702 = vmatpush1.msra.mxu0 0.0
        %703 = vmatprep.subr.mxu0 0.0
        %704 = vmatpush1.msra.mxu0 0.0
        %705 = vmatprep.mubr.f32.mxu0 0.0
        %706 = vmatmul.mubr.f32.gmra.mrb[0].mxu0 %v636
        %v707 = vpop.f32.mrb[0].mxu0
        %v708 = vadd.f32 0.0, %v707
        %v709 = vpop.f32.mrb[0].mxu0
        %710 = vmatprep.mubr.f32.mxu0 0.0
        %711 = vmatmul.mubr.f32.gmra.mrb[0].mxu0 %v639
        %v712 = vpop.f32.mrb[0].mxu0
        %v713 = vadd.f32 0.0, %v712
        %v714 = vpop.f32.mrb[0].mxu0
        %715 = vdwg.mxu0
        %v716 = vadd.f32 %v622, %v708
        %v717 = vadd.f32 %v623, %v713
        %718 = vst.msk [vmem:[#allocation3] sm:$0xff] %vm223, %v716
        %719 = vst.msk [vmem:[#allocation3 + $0x8] sm:$0xff] %vm223, %v717
        %v720 = vld [vmem:[#allocation3] sm:$0xff]
        %v721 = vld [vmem:[#allocation3 + $0x8] sm:$0xff]
        %v722 = vld [vmem:[#allocation2 + $0x2] sm:$0xff]
        %v723 = vld [vmem:[#allocation2 + $0xa] sm:$0xff]
        %s724 = scalar_lea.vmem [#allocation9], 128
        %v725 = vld [vmem:[%s724] sm:$0xff]
        %v726 = vld [vmem:[%s724 + $0x8] sm:$0xff]
        %v727 = vld [vmem:[%s724 + $0x10] sm:$0xff]
        %v728 = vld [vmem:[%s724 + $0x18] sm:$0xff]
        %v729 = vld [vmem:[%s724 + $0x20] sm:$0xff]
        %v730 = vld [vmem:[%s724 + $0x28] sm:$0xff]
        %v731 = vld [vmem:[%s724 + $0x30] sm:$0xff]
        %v732 = vld [vmem:[%s724 + $0x38] sm:$0xff]
        %v734 = vsel %vm223, %v722, 0
        %v737 = vsel %vm223, %v723, 0
        %739 = vmatprep.subr.mxu0 0.0
        %740 = vmatpush1.msra.mxu0 %v725
        %741 = vmatprep.subr.mxu0 0.0
        %742 = vmatpush1.msra.mxu0 %v726
        %743 = vmatprep.subr.mxu0 0.0
        %744 = vmatpush1.msra.mxu0 %v727
        %745 = vmatprep.subr.mxu0 0.0
        %746 = vmatpush1.msra.mxu0 %v728
        %747 = vmatprep.subr.mxu0 0.0
        %748 = vmatpush1.msra.mxu0 %v729
        %749 = vmatprep.subr.mxu0 0.0
        %750 = vmatpush1.msra.mxu0 %v730
        %751 = vmatprep.subr.mxu0 0.0
        %752 = vmatpush1.msra.mxu0 %v731
        %753 = vmatprep.subr.mxu0 0.0
        %754 = vmatpush1.msra.mxu0 %v732
        %755 = vmatprep.subr.mxu0 0.0
        %756 = vmatpush1.msra.mxu0 0.0
        %757 = vmatprep.subr.mxu0 0.0
        %758 = vmatpush1.msra.mxu0 0.0
        %759 = vmatprep.subr.mxu0 0.0
        %760 = vmatpush1.msra.mxu0 0.0
        %761 = vmatprep.subr.mxu0 0.0
        %762 = vmatpush1.msra.mxu0 0.0
        %763 = vmatprep.subr.mxu0 0.0
        %764 = vmatpush1.msra.mxu0 0.0
        %765 = vmatprep.subr.mxu0 0.0
        %766 = vmatpush1.msra.mxu0 0.0
        %767 = vmatprep.subr.mxu0 0.0
        %768 = vmatpush1.msra.mxu0 0.0
        %769 = vmatprep.subr.mxu0 0.0
        %770 = vmatpush1.msra.mxu0 0.0
        %771 = vmatprep.subr.mxu0 0.0
        %772 = vmatpush1.msra.mxu0 0.0
        %773 = vmatprep.subr.mxu0 0.0
        %774 = vmatpush1.msra.mxu0 0.0
        %775 = vmatprep.subr.mxu0 0.0
        %776 = vmatpush1.msra.mxu0 0.0
        %777 = vmatprep.subr.mxu0 0.0
        %778 = vmatpush1.msra.mxu0 0.0
        %779 = vmatprep.subr.mxu0 0.0
        %780 = vmatpush1.msra.mxu0 0.0
        %781 = vmatprep.subr.mxu0 0.0
        %782 = vmatpush1.msra.mxu0 0.0
        %783 = vmatprep.subr.mxu0 0.0
        %784 = vmatpush1.msra.mxu0 0.0
        %785 = vmatprep.subr.mxu0 0.0
        %786 = vmatpush1.msra.mxu0 0.0
        %787 = vmatprep.subr.mxu0 0.0
        %788 = vmatpush1.msra.mxu0 0.0
        %789 = vmatprep.subr.mxu0 0.0
        %790 = vmatpush1.msra.mxu0 0.0
        %791 = vmatprep.subr.mxu0 0.0
        %792 = vmatpush1.msra.mxu0 0.0
        %793 = vmatprep.subr.mxu0 0.0
        %794 = vmatpush1.msra.mxu0 0.0
        %795 = vmatprep.subr.mxu0 0.0
        %796 = vmatpush1.msra.mxu0 0.0
        %797 = vmatprep.subr.mxu0 0.0
        %798 = vmatpush1.msra.mxu0 0.0
        %799 = vmatprep.subr.mxu0 0.0
        %800 = vmatpush1.msra.mxu0 0.0
        %801 = vmatprep.subr.mxu0 0.0
        %802 = vmatpush1.msra.mxu0 0.0
        %803 = vmatprep.mubr.f32.mxu0 0.0
        %804 = vmatmul.mubr.f32.gmra.mrb[0].mxu0 %v734
        %v805 = vpop.f32.mrb[0].mxu0
        %v806 = vadd.f32 0.0, %v805
        %v807 = vpop.f32.mrb[0].mxu0
        %808 = vmatprep.mubr.f32.mxu0 0.0
        %809 = vmatmul.mubr.f32.gmra.mrb[0].mxu0 %v737
        %v810 = vpop.f32.mrb[0].mxu0
        %v811 = vadd.f32 0.0, %v810
        %v812 = vpop.f32.mrb[0].mxu0
        %813 = vdwg.mxu0
        %v814 = vadd.f32 %v720, %v806
        %v815 = vadd.f32 %v721, %v811
        %816 = vst.msk [vmem:[#allocation3] sm:$0xff] %vm223, %v814
        %817 = vst.msk [vmem:[#allocation3 + $0x8] sm:$0xff] %vm223, %v815
        %v818 = vld [vmem:[#allocation3] sm:$0xff]
        %v819 = vld [vmem:[#allocation3 + $0x8] sm:$0xff]
        %v820 = vadd.f32 %v818, %v218
        %v821 = vadd.f32 %v819, %v219
        %822 = vst.msk [vmem:[%s217] sm:$0xff] %vm223, %v820
        %823 = vst.msk [vmem:[%s217 + $0x8] sm:$0xff] %vm223, %v821
        %s824 = sand.u32 %s97, 1
        %s825 = scalar_lea.sflag [#allocation6], %s824
        %s826 = sand.u32 %s97, 1
        %s827 = smul.addr %s826, 16
        %s828 = scalar_lea.vmem [#allocation10], %s827
        // Predicated region
        $region45: #{tpu_custom_call.1} parent=31 // pred_check
          %p829 = pneg %p107
        $region46: #{tpu_custom_call.1} parent=31 // pred_check_branch
          %831 = sbr.rel (%p829) target = $region48
        $region47: #{tpu_custom_call.1} parent=31 // pred_region
          %s833 = ssub.s32 256, 256
          %834 = vsyncadd %s825, %s833
          %s835 = smul.addr %s21, 2
          %s836 = smul.addr %s835, 128
          %s837 = scalar_lea.hbm %s3, %s836
          %s838 = sshll.u32 %s828, 4
          %s839 = int_to_ptr.vmem [resolvable:$true] %s838
          %844 = dma.vmem_to_hbm [thread:$0]  %s839, 256, %s837, %s825, 128, 128, 8
        $region48: #{tpu_custom_call.1} parent=31 // pred_fallthru
          _
      $region32: #{tpu_custom_call.1} parent=5 // pred_fallthru
        _
      %p845 = scmp.le.s32.totalorder 2, %s16
      // Predicated region
      $region49: #{tpu_custom_call.1} parent=5 // pred_check
        %p846 = pneg %p845
      $region50: #{tpu_custom_call.1} parent=5 // pred_check_branch
        %848 = sbr.rel (%p846) target = $region52
      $region51: #{tpu_custom_call.1} parent=5 // pred_region
        %s849 = ssub.s32 %s16, 2
        // Predicated region
        $region53: #{tpu_custom_call.1} parent=51 // pred_check
          %p850 = pneg %p113
        $region54: #{tpu_custom_call.1} parent=51 // pred_check_branch
          %852 = sbr.rel (%p850) target = $region56
        $region55: #{tpu_custom_call.1} parent=51 // pred_region
          %s853 = sand.u32 %s98, 1
          %s854 = scalar_lea.sflag [#allocation6], %s853
          %s855 = sand.u32 %s98, 1
          %s856 = smul.addr %s855, 16
          %s857 = scalar_lea.vmem [#allocation10], %s856
          %858 = dma.done %s854, 256
        $region56: #{tpu_custom_call.1} parent=51 // pred_fallthru
          _
      $region52: #{tpu_custom_call.1} parent=5 // pred_fallthru
        _
    $region6: #{tpu_custom_call.1} parent=1 // loop_footer
      %s20 = sadd.s32 1, %s16
    $region7: #{tpu_custom_call.1} parent=1 // loop_footer_branch
      %15 = sbr.rel target = $region3
    $region8: #{tpu_custom_call.1} parent=1 // loop_exit
      _
    %859 = vsyncpa [#allocation5], 1
    %s860 = scalar_lea.sflag [#allocation5], 1
    %861 = vsyncpa %s860, 1
    %862 = vsyncpa [#allocation8], 1
    %863 = vsyncpa [#allocation6], 1
    %s864 = scalar_lea.sflag [#allocation6], 1
    %865 = vsyncpa %s864, 1

</llo_original>
